<compile_context>
chip_gen: v7x
topology: tpu7x:2x2x1
jax: 0.10.0
libtpu: 0.0.40
codegen_flags: <defaults>
</compile_context>

<pallas_src>
import math
from functools import partial

import jax
import jax.numpy as jnp
from jax.experimental import pallas as pl
from jax.experimental.pallas import tpu as pltpu

EPS = 1e-8  # LayerNorm eps used by the PyTorch module


def _round_up(n, m):
    return ((n + m - 1) // m) * m


def _vmem_limit_bytes():
    """Per-generation scoped-VMEM budget (v5e/v6e: 128 MiB phys, v7x: 64 MiB)."""
    cap = 64 * 1024 * 1024
    try:
        cap = int(pltpu.get_tpu_info().vmem_capacity_bytes)
    except Exception:
        pass
    return max(32 * 1024 * 1024, min((cap * 3) // 4, 96 * 1024 * 1024))


def _ln(x, g, b):
    mu = jnp.mean(x, axis=-1, keepdims=True)
    var = jnp.mean((x - mu) ** 2, axis=-1, keepdims=True)
    return (x - mu) * jax.lax.rsqrt(var + EPS) * g + b


# ---------------------------------------------------------------------------
# GCN layer kernel: relu((adj @ x) @ W^T + b)
#   adj streamed as (tr, tk) bf16 tiles, x fully resident in VMEM (bf16),
#   f32 accumulator initialized with pl.when, reduction axis last ("arbitrary").
# ---------------------------------------------------------------------------
def _gcn_kernel(adj_ref, x_ref, wT_ref, b_ref, o_ref, acc_ref, *, tk, nk):
    k = pl.program_id(1)

    @pl.when(k == 0)
    def _():
        acc_ref[...] = jnp.zeros_like(acc_ref)

    if nk == 1:
        xk = x_ref[...]
    else:
        start = pl.multiple_of(k * tk, tk)
        xk = x_ref[pl.ds(start, tk), :]
    acc_ref[...] += jnp.dot(adj_ref[...], xk, preferred_element_type=jnp.float32)

    @pl.when(k == pl.num_programs(1) - 1)
    def _():
        y = jnp.dot(acc_ref[...].astype(jnp.bfloat16), wT_ref[...],
                    preferred_element_type=jnp.float32) + b_ref[...]
        o_ref[...] = jnp.maximum(y, 0.0)


def _pick_tile(n, cap, align):
    if n <= cap:
        return n
    t = (cap // align) * align
    while t >= align:
        if n % t == 0:
            return t
        t -= align
    return n


def gcn_layer(adj_bf16, x_bf16, wT_bf16, b2d, *, vmem_limit):
    Np, H = x_bf16.shape
    tr = _pick_tile(Np, 512, 16)     # adj row tile (bf16 -> sublane multiple of 16)
    tk = _pick_tile(Np, 1024, 128)   # contraction tile (lane multiple of 128)
    nk = Np // tk
    return pl.pallas_call(
        partial(_gcn_kernel, tk=tk, nk=nk),
        out_shape=jax.ShapeDtypeStruct((Np, H), jnp.float32),
        grid=(Np // tr, nk),
        in_specs=[
            pl.BlockSpec((tr, tk), lambda r, k: (r, k)),   # streamed adj tile (bf16)
            pl.BlockSpec((Np, H), lambda r, k: (0, 0)),    # x resident in VMEM (bf16)
            pl.BlockSpec((H, H), lambda r, k: (0, 0)),     # W^T resident (bf16)
            pl.BlockSpec((1, H), lambda r, k: (0, 0)),     # bias resident
        ],
        out_specs=pl.BlockSpec((tr, H), lambda r, k: (r, 0)),
        scratch_shapes=[pltpu.VMEM((tr, H), jnp.float32)],
        compiler_params=pltpu.CompilerParams(
            dimension_semantics=("parallel", "arbitrary"),
            vmem_limit_bytes=vmem_limit),
    )(adj_bf16, x_bf16, wT_bf16, b2d)


def gcn_stack(adj, x0, gcn_params, *, vmem_limit):
    """Runs all GCN layers; pads N so tiles stay (16/128)-aligned for awkward N."""
    N, _ = x0.shape
    Np = _round_up(N, 512) if N > 512 else N
    if Np != N:
        adj = jnp.pad(adj, ((0, Np - N), (0, Np - N)))   # zero rows/cols: no effect
        x0 = jnp.pad(x0, ((0, Np - N), (0, 0)))
    adj_bf = adj.astype(jnp.bfloat16)
    x = x0
    for (w, b) in gcn_params:
        x = gcn_layer(adj_bf, x.astype(jnp.bfloat16),
                      jnp.transpose(w).astype(jnp.bfloat16), b,
                      vmem_limit=vmem_limit)
    return x[:N] if Np != N else x


# ---------------------------------------------------------------------------
# Fused transformer stack + final LayerNorm + pos/neg logits kernel.
# One grid step processes a (Bt, L, H) batch tile; all block weights resident.
# ---------------------------------------------------------------------------
def _blocks_kernel(x_ref, pos_ref, neg_ref,
                   ln1g_ref, ln1b_ref,
                   wq_ref, wk_ref, wv_ref, bq_ref, bk_ref, bv_ref,
                   wo_ref, bo_ref,
                   ln2g_ref, ln2b_ref, w1_ref, b1_ref, w2_ref, b2_ref,
                   lng_ref, lnb_ref,
                   posl_ref, negl_ref,
                   *, num_heads, num_blocks):
    Bt, L, H = x_ref.shape
    hd = H // num_heads
    BtL = Bt * L
    Lpad = posl_ref.shape[-1]
    bf16 = jnp.bfloat16

    x = x_ref[...].reshape(BtL, H)          # f32, flattened slab for MXU matmuls

    # Causal mask built once at (L, L); broadcasts over the batch dimension.
    row = jax.lax.broadcasted_iota(jnp.int32, (L, L), 0)
    col = jax.lax.broadcasted_iota(jnp.int32, (L, L), 1)
    allow = (col <= row)[None]              # (1, L, L)

    for i in range(num_blocks):             # static unroll, weights stay in VMEM
        q_in = _ln(x, ln1g_ref[i], ln1b_ref[i])                    # f32
        q_in_b = q_in.astype(bf16)
        x_b = x.astype(bf16)

        # Per-head attention: weights are pre-split per head (wrapper), so we never
        # lane-slice activations; the output projection is fused into the head loop.
        mha = jnp.zeros((BtL, H), jnp.float32)
        for h in range(num_heads):
            qh = (jnp.dot(q_in_b, wq_ref[i, h],
                          preferred_element_type=jnp.float32)
                  + bq_ref[i, h]).reshape(Bt, L, hd)               # scale folded in
            kh = (jnp.dot(x_b, wk_ref[i, h],
                          preferred_element_type=jnp.float32)
                  + bk_ref[i, h]).reshape(Bt, L, hd)
            vh = (jnp.dot(x_b, wv_ref[i, h],
                          preferred_element_type=jnp.float32)
                  + bv_ref[i, h]).reshape(Bt, L, hd)
            s = jnp.einsum('bqd,bkd->bqk', qh.astype(bf16), kh.astype(bf16),
                           preferred_element_type=jnp.float32)
            s = jnp.where(allow, s, -1e30)
            m = jnp.max(s, axis=-1, keepdims=True)
            e = jnp.exp(s - m)
            p = e * pl.reciprocal(jnp.sum(e, axis=-1, keepdims=True), approx=True)
            ctx = jnp.einsum('bqk,bkd->bqd', p.astype(bf16), vh.astype(bf16),
                             preferred_element_type=jnp.float32)
            mha = mha + jnp.dot(ctx.reshape(BtL, hd).astype(bf16), wo_ref[i, h],
                                preferred_element_type=jnp.float32)
        mha = mha + bo_ref[i]

        s1 = q_in + mha
        h2 = _ln(s1, ln2g_ref[i], ln2b_ref[i])
        y = jnp.maximum(
            jnp.dot(h2.astype(bf16), w1_ref[i],
                    preferred_element_type=jnp.float32) + b1_ref[i], 0.0)
        z = jnp.dot(y.astype(bf16), w2_ref[i],
                    preferred_element_type=jnp.float32) + b2_ref[i]
        x = z + h2

    feats = _ln(x, lng_ref[...], lnb_ref[...]).reshape(Bt, L, H)
    posl = jnp.sum(feats * pos_ref[...].astype(jnp.float32), axis=-1)   # (Bt, L)
    negl = jnp.sum(feats * neg_ref[...].astype(jnp.float32), axis=-1)
    if Lpad > L:                                       # lane-dense (128) output rows
        pad = jnp.zeros((Bt, Lpad - L), jnp.float32)
        posl = jnp.concatenate([posl, pad], axis=-1)
        negl = jnp.concatenate([negl, pad], axis=-1)
    posl_ref[0] = posl
    negl_ref[0] = negl


def transformer_and_logits(seqs, blocks, lng, lnb, pos_embs, neg_embs,
                           *, num_heads, vmem_limit):
    B, L, H = seqs.shape
    nb = len(blocks)
    nh = num_heads
    hd = H // nh
    bf16 = jnp.bfloat16
    scale = 1.0 / math.sqrt(hd)

    # Pre-transpose, pre-split per head, and fold the softmax scale into wq/bq.
    def heads_out(name, s=1.0):        # (nb, nh, H, hd): output dim split by head
        return jnp.stack([
            (jnp.transpose(blk[name]) * s).reshape(H, nh, hd).transpose(1, 0, 2)
            for blk in blocks]).astype(bf16)

    def heads_bias(name, s=1.0):       # (nb, nh, 1, hd)
        return jnp.stack([
            (blk[name] * s).reshape(1, nh, hd).transpose(1, 0, 2)
            for blk in blocks])

    wq, wk, wv = heads_out('wq', scale), heads_out('wk'), heads_out('wv')
    bq, bk, bv = heads_bias('bq', scale), heads_bias('bk'), heads_bias('bv')
    wo = jnp.stack([jnp.transpose(blk['wo']).reshape(nh, hd, H)
                    for blk in blocks]).astype(bf16)          # (nb, nh, hd, H)
    w1 = jnp.stack([jnp.transpose(blk['w1']) for blk in blocks]).astype(bf16)
    w2 = jnp.stack([jnp.transpose(blk['w2']) for blk in blocks]).astype(bf16)
    ln1g = jnp.stack([blk['ln1g'] for blk in blocks])
    ln1b = jnp.stack([blk['ln1b'] for blk in blocks])
    ln2g = jnp.stack([blk['ln2g'] for blk in blocks])
    ln2b = jnp.stack([blk['ln2b'] for blk in blocks])
    bo = jnp.stack([blk['bo'] for blk in blocks])
    b1 = jnp.stack([blk['b1'] for blk in blocks])
    b2 = jnp.stack([blk['b2'] for blk in blocks])

    # Batch tile: target ~512 flattened MXU rows per step; pad B (cdiv) so Bt never
    # collapses to 1 for awkward B, and expose >=2 grid steps when B > 1 (v7x: 2 TCs).
    rows_target = 512
    Bt = max(1, min(B, rows_target // max(L, 1)))
    if B > 1:
        Bt = min(Bt, (B + 1) // 2)
    G = (B + Bt - 1) // Bt
    Bp = G * Bt
    if Bp != B:
        padb = ((0, Bp - B), (0, 0), (0, 0))
        seqs = jnp.pad(seqs, padb)
        pos_embs = jnp.pad(pos_embs, padb)
        neg_embs = jnp.pad(neg_embs, padb)
    Lpad = max(128, _round_up(L, 128))

    batch_spec = pl.BlockSpec((Bt, L, H), lambda g: (g, 0, 0))
    w4spec = pl.BlockSpec((nb, nh, H, hd), lambda g: (0, 0, 0, 0))
    b4spec = pl.BlockSpec((nb, nh, 1, hd), lambda g: (0, 0, 0, 0))
    wo4spec = pl.BlockSpec((nb, nh, hd, H), lambda g: (0, 0, 0, 0))
    wspec = pl.BlockSpec((nb, H, H), lambda g: (0, 0, 0))
    pspec = pl.BlockSpec((nb, 1, H), lambda g: (0, 0, 0))
    lnspec = pl.BlockSpec((1, H), lambda g: (0, 0))
    out_spec = pl.BlockSpec((1, Bt, Lpad), lambda g: (g, 0, 0))

    posl, negl = pl.pallas_call(
        partial(_blocks_kernel, num_heads=nh, num_blocks=nb),
        out_shape=(jax.ShapeDtypeStruct((G, Bt, Lpad), jnp.float32),
                   jax.ShapeDtypeStruct((G, Bt, Lpad), jnp.float32)),
        grid=(G,),
        in_specs=[batch_spec, batch_spec, batch_spec,
                  pspec, pspec,
                  w4spec, w4spec, w4spec, b4spec, b4spec, b4spec,
                  wo4spec, pspec,
                  pspec, pspec, wspec, pspec, wspec, pspec,
                  lnspec, lnspec],
        out_specs=(out_spec, out_spec),
        compiler_params=pltpu.CompilerParams(
            dimension_semantics=("parallel",),
            vmem_limit_bytes=vmem_limit),
    )(seqs, pos_embs.astype(bf16), neg_embs.astype(bf16),
      ln1g, ln1b, wq, wk, wv, bq, bk, bv, wo, bo,
      ln2g, ln2b, w1, b1, w2, b2, lng, lnb)

    posl = posl.reshape(Bp, Lpad)[:B, :L]
    negl = negl.reshape(Bp, Lpad)[:B, :L]
    return posl, negl


# ---------------------------------------------------------------------------
# Parameter init (deterministic, shapes per SASRec.__init__) and forward glue
# ---------------------------------------------------------------------------
def init_params(key, item_num, maxlen, H, num_blocks, num_gcn):
    keys = iter(jax.random.split(key, 64))
    N = item_num + 1
    p = {}
    p['item_emb'] = (jax.random.normal(next(keys), (N, H), jnp.float32) * 0.1).at[0].set(0.0)
    p['pos_emb'] = (jax.random.normal(next(keys), (maxlen + 1, H), jnp.float32) * 0.1).at[0].set(0.0)
    adj = jax.random.uniform(next(keys), (N, N), jnp.float32)
    p['adj'] = adj / jnp.sum(adj, axis=1, keepdims=True)
    p['gcn'] = []
    for _ in range(num_gcn):
        w = jax.random.normal(next(keys), (H, H), jnp.float32) / math.sqrt(H)
        b = jax.random.normal(next(keys), (1, H), jnp.float32) * 0.01
        p['gcn'].append((w, b))
    p['blocks'] = []
    for _ in range(num_blocks):
        blk = {'ln1g': jnp.ones((1, H), jnp.float32), 'ln1b': jnp.zeros((1, H), jnp.float32),
               'ln2g': jnp.ones((1, H), jnp.float32), 'ln2b': jnp.zeros((1, H), jnp.float32)}
        for name in ('wq', 'wk', 'wv', 'wo', 'w1', 'w2'):
            blk[name] = jax.random.normal(next(keys), (H, H), jnp.float32) / math.sqrt(H)
        for name in ('bq', 'bk', 'bv', 'bo', 'b1', 'b2'):
            blk[name] = jax.random.normal(next(keys), (1, H), jnp.float32) * 0.01
        p['blocks'].append(blk)
    p['lng'] = jnp.ones((1, H), jnp.float32)
    p['lnb'] = jnp.zeros((1, H), jnp.float32)
    return p


def sasrec_forward(params, user_ids, log_seqs, pos_seqs, neg_seqs, *, num_heads):
    del user_ids  # unused by SASRec.forward
    H = params['item_emb'].shape[1]
    vmem_limit = _vmem_limit_bytes()
    # get_graph_embeddings (layer_agg=None -> last GCN output)
    graph_emb = gcn_stack(params['adj'], params['item_emb'], params['gcn'],
                          vmem_limit=vmem_limit)
    B, L = log_seqs.shape
    seqs = graph_emb[log_seqs] * math.sqrt(H)
    poss = jnp.arange(1, L + 1, dtype=jnp.int32)[None, :] * (log_seqs != 0).astype(jnp.int32)
    seqs = seqs + params['pos_emb'][poss]
    # TODO(synk): emb_dropout / attention & FFN dropout are stochastic; inference identity here.
    pos_embs = params['item_emb'][pos_seqs]   # forward() overrides graph lookups with item_emb
    neg_embs = params['item_emb'][neg_seqs]
    return transformer_and_logits(seqs, params['blocks'], params['lng'], params['lnb'],
                                  pos_embs, neg_embs, num_heads=num_heads,
                                  vmem_limit=vmem_limit)


# ---------------------------------------------------------------------------
# Pure-JAX (f32) reference for validation
# ---------------------------------------------------------------------------
def ref_forward(params, log_seqs, pos_seqs, neg_seqs, *, num_heads):
    H = params['item_emb'].shape[1]
    x = params['item_emb']
    for (w, b) in params['gcn']:
        x = jnp.maximum(params['adj'] @ x @ w.T + b, 0.0)
    graph_emb = x
    B, L = log_seqs.shape
    seqs = graph_emb[log_seqs] * math.sqrt(H)
    poss = jnp.arange(1, L + 1, dtype=jnp.int32)[None, :] * (log_seqs != 0).astype(jnp.int32)
    seqs = seqs + params['pos_emb'][poss]
    hd = H // num_heads
    allow = jnp.tril(jnp.ones((L, L), bool))
    for blk in params['blocks']:
        q_in = _ln(seqs, blk['ln1g'], blk['ln1b'])
        q = q_in @ blk['wq'].T + blk['bq']
        k = seqs @ blk['wk'].T + blk['bk']
        v = seqs @ blk['wv'].T + blk['bv']
        qh = q.reshape(B, L, num_heads, hd)
        kh = k.reshape(B, L, num_heads, hd)
        vh = v.reshape(B, L, num_heads, hd)
        s = jnp.einsum('blnd,bmnd->bnlm', qh, kh) / math.sqrt(hd)
        s = jnp.where(allow[None, None], s, -1e30)
        s_max = jnp.max(s, axis=-1, keepdims=True)
        e = jnp.exp(s - s_max)
        p = e / jnp.sum(e, axis=-1, keepdims=True)
        ctx = jnp.einsum('bnlm,bmnd->blnd', p, vh).reshape(B, L, H)
        mha = ctx @ blk['wo'].T + blk['bo']
        h2 = _ln(q_in + mha, blk['ln2g'], blk['ln2b'])
        y = jnp.maximum(h2 @ blk['w1'].T + blk['b1'], 0.0)
        seqs = (y @ blk['w2'].T + blk['b2']) + h2
    feats = _ln(seqs, params['lng'], params['lnb'])
    pos_embs = params['item_emb'][pos_seqs]
    neg_embs = params['item_emb'][neg_seqs]
    return (feats * pos_embs).sum(-1), (feats * neg_embs).sum(-1)


if __name__ == "__main__":
    item_num, user_num = 63, 10          # N = item_num + 1 = 64
    H, maxlen, num_heads, num_blocks, num_gcn = 32, 8, 2, 2, 2
    B = 2

    key = jax.random.PRNGKey(0)
    kp, k1, k2, k3 = jax.random.split(key, 4)
    params = init_params(kp, item_num, maxlen, H, num_blocks, num_gcn)

    log_seqs = jax.random.randint(k1, (B, maxlen), 0, item_num + 1, dtype=jnp.int32)
    pos_seqs = jax.random.randint(k2, (B, maxlen), 1, item_num + 1, dtype=jnp.int32)
    neg_seqs = jax.random.randint(k3, (B, maxlen), 1, item_num + 1, dtype=jnp.int32)
    user_ids = jnp.arange(B, dtype=jnp.int32)

    pos_logits, neg_logits = sasrec_forward(
        params, user_ids, log_seqs, pos_seqs, neg_seqs, num_heads=num_heads)
    jax.block_until_ready((pos_logits, neg_logits))

    ref_pos, ref_neg = ref_forward(params, log_seqs, pos_seqs, neg_seqs, num_heads=num_heads)
    assert pos_logits.shape == (B, maxlen) and neg_logits.shape == (B, maxlen)
    # bf16 MXU operands (adj/x/weights/pos-neg embs) + approx reciprocal give ~1% rel error.
    assert jnp.allclose(pos_logits, ref_pos, atol=5e-2, rtol=5e-2), "pos_logits mismatch"
    assert jnp.allclose(neg_logits, ref_neg, atol=5e-2, rtol=5e-2), "neg_logits mismatch"
    print("KERNEL_OK")
</pallas_src>

<mosaic_0001>
module attributes {stable_mosaic.version = 11 : i64} {
  func.func @_gcn_kernel(%arg0: i32, %arg1: i32, %arg2: memref<64x64xbf16, #tpu.memory_space<vmem>>, %arg3: memref<64x32xbf16, #tpu.memory_space<vmem>>, %arg4: memref<32x32xbf16, #tpu.memory_space<vmem>>, %arg5: memref<1x32xf32, #tpu.memory_space<vmem>>, %arg6: memref<64x32xf32, #tpu.memory_space<vmem>>, %arg7: memref<64x32xf32, #tpu.memory_space<vmem>>) attributes {dimension_semantics = [#tpu.dimension_semantics<parallel>, #tpu.dimension_semantics<arbitrary>], iteration_bounds = array<i64: 1, 1>, scalar_prefetch = 0 : i64, scratch_operands = 1 : i64, tpu.core_type = #tpu.core_type<tc>, window_params = [{transform_indices = @transform_0, window_bounds = array<i64: 64, 64>}, {pipeline_mode = #tpu.pipeline_mode<synchronous>, transform_indices = @transform_1, window_bounds = array<i64: 64, 32>}, {pipeline_mode = #tpu.pipeline_mode<synchronous>, transform_indices = @transform_2, window_bounds = array<i64: 32, 32>}, {pipeline_mode = #tpu.pipeline_mode<synchronous>, transform_indices = @transform_3, window_bounds = array<i64: 1, 32>}, {transform_indices = @transform_4, window_bounds = array<i64: 64, 32>}]} {
    %c0_i32 = arith.constant 0 : i32
    %0 = arith.cmpi eq, %arg1, %c0_i32 : i32
    %1 = arith.extui %0 : i1 to i32
    %c0_i32_0 = arith.constant 0 : i32
    %2 = arith.cmpi ne, %1, %c0_i32_0 : i32
    scf.if %2 {
      %cst_10 = arith.constant 0.000000e+00 : f32
      %12 = vector.broadcast %cst_10 : f32 to vector<64x32xf32>
      %c0_11 = arith.constant 0 : index
      %c0_12 = arith.constant 0 : index
      %13 = vector.load %arg7[%c0_11, %c0_12] : memref<64x32xf32, #tpu.memory_space<vmem>>, vector<64x32xf32>
      tpu.vector_store %arg7[%c0_11, %c0_12], %12 {strides = array<i32>} : memref<64x32xf32, #tpu.memory_space<vmem>>, vector<64x32xf32>,
    } else {
    }
    %c0 = arith.constant 0 : index
    %c0_1 = arith.constant 0 : index
    %3 = vector.load %arg3[%c0, %c0_1] : memref<64x32xbf16, #tpu.memory_space<vmem>>, vector<64x32xbf16>
    %c0_2 = arith.constant 0 : index
    %c0_3 = arith.constant 0 : index
    %4 = vector.load %arg7[%c0_2, %c0_3] : memref<64x32xf32, #tpu.memory_space<vmem>>, vector<64x32xf32>
    %c0_4 = arith.constant 0 : index
    %c0_5 = arith.constant 0 : index
    %5 = vector.load %arg2[%c0_4, %c0_5] : memref<64x64xbf16, #tpu.memory_space<vmem>>, vector<64x64xbf16>
    %cst = arith.constant dense<0.000000e+00> : vector<64x32xf32>
    %6 = tpu.matmul %5, %3, %cst {dimension_numbers = #tpu.dot_dimension_numbers<[1], [0], [0], [1], [0, 0, 1, 1], [], []>} : vector<64x64xbf16>, vector<64x32xbf16>, vector<64x32xf32> -> vector<64x32xf32>
    %7 = arith.addf %4, %6 : vector<64x32xf32>
    %c0_6 = arith.constant 0 : index
    %c0_7 = arith.constant 0 : index
    %8 = vector.load %arg7[%c0_6, %c0_7] : memref<64x32xf32, #tpu.memory_space<vmem>>, vector<64x32xf32>
    tpu.vector_store %arg7[%c0_6, %c0_7], %7 {strides = array<i32>} : memref<64x32xf32, #tpu.memory_space<vmem>>, vector<64x32xf32>,
    %c0_i32_8 = arith.constant 0 : i32
    %9 = arith.cmpi eq, %arg1, %c0_i32_8 : i32
    %10 = arith.extui %9 : i1 to i32
    %c0_i32_9 = arith.constant 0 : i32
    %11 = arith.cmpi ne, %10, %c0_i32_9 : i32
    scf.if %11 {
      %c0_10 = arith.constant 0 : index
      %c0_11 = arith.constant 0 : index
      %12 = vector.load %arg7[%c0_10, %c0_11] : memref<64x32xf32, #tpu.memory_space<vmem>>, vector<64x32xf32>
      %13 = arith.truncf %12 : vector<64x32xf32> to vector<64x32xbf16>
      %c0_12 = arith.constant 0 : index
      %c0_13 = arith.constant 0 : index
      %14 = vector.load %arg4[%c0_12, %c0_13] : memref<32x32xbf16, #tpu.memory_space<vmem>>, vector<32x32xbf16>
      %cst_14 = arith.constant dense<0.000000e+00> : vector<64x32xf32>
      %15 = tpu.matmul %13, %14, %cst_14 {dimension_numbers = #tpu.dot_dimension_numbers<[1], [0], [0], [1], [0, 0, 1, 1], [], []>} : vector<64x32xbf16>, vector<32x32xbf16>, vector<64x32xf32> -> vector<64x32xf32>
      %c0_15 = arith.constant 0 : index
      %c0_16 = arith.constant 0 : index
      %16 = vector.load %arg5[%c0_15, %c0_16] : memref<1x32xf32, #tpu.memory_space<vmem>>, vector<1x32xf32>
      %17 = vector.broadcast %16 : vector<1x32xf32> to vector<64x32xf32>
      %18 = arith.addf %15, %17 : vector<64x32xf32>
      %cst_17 = arith.constant 0.000000e+00 : f32
      %19 = vector.broadcast %cst_17 : f32 to vector<64x32xf32>
      %20 = arith.maximumf %18, %19 : vector<64x32xf32>
      %c0_18 = arith.constant 0 : index
      %c0_19 = arith.constant 0 : index
      %21 = vector.load %arg6[%c0_18, %c0_19] : memref<64x32xf32, #tpu.memory_space<vmem>>, vector<64x32xf32>
      tpu.vector_store %arg6[%c0_18, %c0_19], %20 {strides = array<i32>} : memref<64x32xf32, #tpu.memory_space<vmem>>, vector<64x32xf32>,
    } else {
    }
    return
  }
  func.func @transform_0(%arg0: i32, %arg1: i32) -> (i32, i32) {
    %c0_i32 = arith.constant 0 : i32
    return %arg0, %arg1 : i32, i32
  }
  func.func @transform_1(%arg0: i32, %arg1: i32) -> (i32, i32) {
    %c0_i32 = arith.constant 0 : i32
    %c0_i32_0 = arith.constant 0 : i32
    %c0_i32_1 = arith.constant 0 : i32
    return %c0_i32, %c0_i32_0 : i32, i32
  }
  func.func @transform_2(%arg0: i32, %arg1: i32) -> (i32, i32) {
    %c0_i32 = arith.constant 0 : i32
    %c0_i32_0 = arith.constant 0 : i32
    %c0_i32_1 = arith.constant 0 : i32
    return %c0_i32, %c0_i32_0 : i32, i32
  }
  func.func @transform_3(%arg0: i32, %arg1: i32) -> (i32, i32) {
    %c0_i32 = arith.constant 0 : i32
    %c0_i32_0 = arith.constant 0 : i32
    %c0_i32_1 = arith.constant 0 : i32
    return %c0_i32, %c0_i32_0 : i32, i32
  }
  func.func @transform_4(%arg0: i32, %arg1: i32) -> (i32, i32) {
    %c0_i32 = arith.constant 0 : i32
    %c0_i32_0 = arith.constant 0 : i32
    return %arg0, %c0_i32 : i32, i32
  }
}

</mosaic_0001>

<llo_original>
// kernel: tpu_custom_call.1
$region0: #{tpu_custom_call.1}
  #allocation0 [shape = 'u32[]', space=smem, size = 0x4, offset = 0x4, fixed_abs, tag = 'smem constant byte address 0x4 - core index']
  #allocation1 [shape = 'u32[144,128]{1,0:T(1,128)}', space=vmem, size = 0x12000, scoped, tag = 'internal scratch']
  #allocation2 [shape = 'f32[64,32]{1,0:T(8,128)}', space=vmem, size = 0x8000, scoped, tag = 'scratch operand']
  %s0 = inlined_call_operand.vmem [shape: bf16[64,64], index: 0, kind: input, shape index: {}]
  %s1 = inlined_call_operand.vmem [shape: bf16[64,32], index: 1, kind: input, shape index: {}]
  %s2 = inlined_call_operand.vmem [shape: bf16[32,32], index: 2, kind: input, shape index: {}]
  %s3 = inlined_call_operand.vmem [shape: f32[1,32], index: 3, kind: input, shape index: {}]
  %s4 = inlined_call_operand.vmem [shape: f32[64,32], index: 4, kind: output, shape index: {}]
  %s5 = sld [smem:[#allocation0]]
  $region34: #{tpu_custom_call.1} parent=0
    _
  %s7 = ssub.s32 1, %s5
  %s8 = scalar_select 0, %s7, %s5
  // Predicated region
  $region2: #{tpu_custom_call.1} parent=0 // pred_check
    _
  $region3: #{tpu_custom_call.1} parent=0 // pred_check_branch
    %10 = sbr.rel (0) target = $region5
  $region4: #{tpu_custom_call.1} parent=0 // pred_region
    _
  $region5: #{tpu_custom_call.1} parent=0 // pred_fallthru
    _
  // Predicated region
  $region6: #{tpu_custom_call.1} parent=0 // pred_check
    _
  $region7: #{tpu_custom_call.1} parent=0 // pred_check_branch
    %12 = sbr.rel (0) target = $region9
  $region8: #{tpu_custom_call.1} parent=0 // pred_region
    _
  $region9: #{tpu_custom_call.1} parent=0 // pred_fallthru
    _
  // Predicated region
  $region10: #{tpu_custom_call.1} parent=0 // pred_check
    _
  $region11: #{tpu_custom_call.1} parent=0 // pred_check_branch
    %14 = sbr.rel (0) target = $region13
  $region12: #{tpu_custom_call.1} parent=0 // pred_region
    _
  $region13: #{tpu_custom_call.1} parent=0 // pred_fallthru
    _
  // Predicated region
  $region14: #{tpu_custom_call.1} parent=0 // pred_check
    _
  $region15: #{tpu_custom_call.1} parent=0 // pred_check_branch
    %16 = sbr.rel (0) target = $region17
  $region16: #{tpu_custom_call.1} parent=0 // pred_region
    _
  $region17: #{tpu_custom_call.1} parent=0 // pred_fallthru
    _
  %p18 = scmp.eq.s32.totalorder 0, 0
  // Predicated region
  $region18: #{tpu_custom_call.1} parent=0 // pred_check
    %p19 = pneg %p18
  $region19: #{tpu_custom_call.1} parent=0 // pred_check_branch
    %21 = sbr.rel (%p19) target = $region21
  $region20: #{tpu_custom_call.1} parent=0 // pred_region
    %vm22 = vcmask 261120
    %23 = vst.msk [vmem:[#allocation2] sm:$0xff] %vm22, 0.0
    %24 = vst.msk [vmem:[#allocation2 + $0x8] sm:$0xff] %vm22, 0.0
    %25 = vst.msk [vmem:[#allocation2 + $0x10] sm:$0xff] %vm22, 0.0
    %26 = vst.msk [vmem:[#allocation2 + $0x18] sm:$0xff] %vm22, 0.0
    %27 = vst.msk [vmem:[#allocation2 + $0x20] sm:$0xff] %vm22, 0.0
    %28 = vst.msk [vmem:[#allocation2 + $0x28] sm:$0xff] %vm22, 0.0
    %29 = vst.msk [vmem:[#allocation2 + $0x30] sm:$0xff] %vm22, 0.0
    %30 = vst.msk [vmem:[#allocation2 + $0x38] sm:$0xff] %vm22, 0.0
  $region21: #{tpu_custom_call.1} parent=0 // pred_fallthru
    _
  %v31 = vld [vmem:[%s1] sm:$0xf]
  %v32 = vld [vmem:[%s1 + $0x4] sm:$0xf]
  %v33 = vld [vmem:[%s1 + $0x8] sm:$0xf]
  %v34 = vld [vmem:[%s1 + $0xc] sm:$0xf]
  %v35 = vld [vmem:[%s1 + $0x10] sm:$0xf]
  %v36 = vld [vmem:[%s1 + $0x14] sm:$0xf]
  %v37 = vld [vmem:[%s1 + $0x18] sm:$0xf]
  %v38 = vld [vmem:[%s1 + $0x1c] sm:$0xf]
  %v39 = vld [vmem:[#allocation2] sm:$0xff]
  %v40 = vld [vmem:[#allocation2 + $0x8] sm:$0xff]
  %v41 = vld [vmem:[#allocation2 + $0x10] sm:$0xff]
  %v42 = vld [vmem:[#allocation2 + $0x18] sm:$0xff]
  %v43 = vld [vmem:[#allocation2 + $0x20] sm:$0xff]
  %v44 = vld [vmem:[#allocation2 + $0x28] sm:$0xff]
  %v45 = vld [vmem:[#allocation2 + $0x30] sm:$0xff]
  %v46 = vld [vmem:[#allocation2 + $0x38] sm:$0xff]
  %v47 = vld [vmem:[%s0] sm:$0xf]
  %v48 = vld [vmem:[%s0 + $0x4] sm:$0xf]
  %v49 = vld [vmem:[%s0 + $0x8] sm:$0xf]
  %v50 = vld [vmem:[%s0 + $0xc] sm:$0xf]
  %v51 = vld [vmem:[%s0 + $0x10] sm:$0xf]
  %v52 = vld [vmem:[%s0 + $0x14] sm:$0xf]
  %v53 = vld [vmem:[%s0 + $0x18] sm:$0xf]
  %v54 = vld [vmem:[%s0 + $0x1c] sm:$0xf]
  %v63 = vunpack.c.l.b16 %v47
  %v64 = vunpack.c.l.b16 %v48
  %v65 = vunpack.c.l.b16 %v49
  %v66 = vunpack.c.l.b16 %v50
  %v67 = vunpack.c.l.b16 %v51
  %v68 = vunpack.c.l.b16 %v52
  %v69 = vunpack.c.l.b16 %v53
  %v70 = vunpack.c.l.b16 %v54
  %v71 = vpack.c.b16 %v64, %v63
  %v72 = vpack.c.b16 %v66, %v65
  %v73 = vpack.c.b16 %v68, %v67
  %v74 = vpack.c.b16 %v70, %v69
  %v83 = vunpack.c.l.b16 %v31
  %v84 = vunpack.c.l.b16 %v32
  %v85 = vunpack.c.l.b16 %v33
  %v86 = vunpack.c.l.b16 %v34
  %v87 = vunpack.c.l.b16 %v35
  %v88 = vunpack.c.l.b16 %v36
  %v89 = vunpack.c.l.b16 %v37
  %v90 = vunpack.c.l.b16 %v38
  %v91 = vpack.c.b16 %v84, %v83
  %v92 = vpack.c.b16 %v86, %v85
  %v93 = vpack.c.b16 %v88, %v87
  %v94 = vpack.c.b16 %v90, %v89
  %vm99 = vcmask 523264
  %v101 = vsel %vm99, %v71, 0
  %v104 = vsel %vm99, %v72, 0
  %v107 = vsel %vm99, %v73, 0
  %v110 = vsel %vm99, %v74, 0
  %112 = vmatprep.subr.bf16.mxu0 0
  %113 = vmatpush1.bf16.msra.mxu0 %v91
  %114 = vmatprep.subr.bf16.mxu0 0
  %115 = vmatpush1.bf16.msra.mxu0 %v92
  %116 = vmatprep.subr.bf16.mxu0 0
  %117 = vmatpush1.bf16.msra.mxu0 %v93
  %118 = vmatprep.subr.bf16.mxu0 0
  %119 = vmatpush1.bf16.msra.mxu0 %v94
  %120 = vmatprep.subr.bf16.mxu0 0
  %121 = vmatpush1.bf16.msra.mxu0 0
  %122 = vmatprep.subr.bf16.mxu0 0
  %123 = vmatpush1.bf16.msra.mxu0 0
  %124 = vmatprep.subr.bf16.mxu0 0
  %125 = vmatpush1.bf16.msra.mxu0 0
  %126 = vmatprep.subr.bf16.mxu0 0
  %127 = vmatpush1.bf16.msra.mxu0 0
  %128 = vmatprep.subr.bf16.mxu0 0
  %129 = vmatpush1.bf16.msra.mxu0 0
  %130 = vmatprep.subr.bf16.mxu0 0
  %131 = vmatpush1.bf16.msra.mxu0 0
  %132 = vmatprep.subr.bf16.mxu0 0
  %133 = vmatpush1.bf16.msra.mxu0 0
  %134 = vmatprep.subr.bf16.mxu0 0
  %135 = vmatpush1.bf16.msra.mxu0 0
  %136 = vmatprep.subr.bf16.mxu0 0
  %137 = vmatpush1.bf16.msra.mxu0 0
  %138 = vmatprep.subr.bf16.mxu0 0
  %139 = vmatpush1.bf16.msra.mxu0 0
  %140 = vmatprep.subr.bf16.mxu0 0
  %141 = vmatpush1.bf16.msra.mxu0 0
  %142 = vmatprep.subr.bf16.mxu0 0
  %143 = vmatpush1.bf16.msra.mxu0 0
  %144 = vmatprep.mubr.bf16.mxu0 0
  %145 = vmatmul.mubr.bf16.gmra.mrb[0].mxu0 %v101
  %v146 = vpop.f32.mrb[0].mxu0
  %v147 = vadd.f32 0.0, %v146
  %v148 = vpop.f32.mrb[0].mxu0
  %v149 = vpop.f32.mrb[0].mxu0
  %v150 = vadd.f32 0.0, %v149
  %v151 = vpop.f32.mrb[0].mxu0
  %152 = vmatprep.mubr.bf16.mxu0 0
  %153 = vmatmul.mubr.bf16.gmra.mrb[0].mxu0 %v104
  %v154 = vpop.f32.mrb[0].mxu0
  %v155 = vadd.f32 0.0, %v154
  %v156 = vpop.f32.mrb[0].mxu0
  %v157 = vpop.f32.mrb[0].mxu0
  %v158 = vadd.f32 0.0, %v157
  %v159 = vpop.f32.mrb[0].mxu0
  %160 = vmatprep.mubr.bf16.mxu0 0
  %161 = vmatmul.mubr.bf16.gmra.mrb[0].mxu0 %v107
  %v162 = vpop.f32.mrb[0].mxu0
  %v163 = vadd.f32 0.0, %v162
  %v164 = vpop.f32.mrb[0].mxu0
  %v165 = vpop.f32.mrb[0].mxu0
  %v166 = vadd.f32 0.0, %v165
  %v167 = vpop.f32.mrb[0].mxu0
  %168 = vmatprep.mubr.bf16.mxu0 0
  %169 = vmatmul.mubr.bf16.gmra.mrb[0].mxu0 %v110
  %v170 = vpop.f32.mrb[0].mxu0
  %v171 = vadd.f32 0.0, %v170
  %v172 = vpop.f32.mrb[0].mxu0
  %v173 = vpop.f32.mrb[0].mxu0
  %v174 = vadd.f32 0.0, %v173
  %v175 = vpop.f32.mrb[0].mxu0
  %176 = vdwg.mxu0
  %v177 = vadd.f32 %v39, %v147
  %v178 = vadd.f32 %v40, %v150
  %v179 = vadd.f32 %v41, %v155
  %v180 = vadd.f32 %v42, %v158
  %v181 = vadd.f32 %v43, %v163
  %v182 = vadd.f32 %v44, %v166
  %v183 = vadd.f32 %v45, %v171
  %v184 = vadd.f32 %v46, %v174
  %vm185 = vcmask 261120
  %186 = vst.msk [vmem:[#allocation2] sm:$0xff] %vm185, %v177
  %187 = vst.msk [vmem:[#allocation2 + $0x8] sm:$0xff] %vm185, %v178
  %188 = vst.msk [vmem:[#allocation2 + $0x10] sm:$0xff] %vm185, %v179
  %189 = vst.msk [vmem:[#allocation2 + $0x18] sm:$0xff] %vm185, %v180
  %190 = vst.msk [vmem:[#allocation2 + $0x20] sm:$0xff] %vm185, %v181
  %191 = vst.msk [vmem:[#allocation2 + $0x28] sm:$0xff] %vm185, %v182
  %192 = vst.msk [vmem:[#allocation2 + $0x30] sm:$0xff] %vm185, %v183
  %193 = vst.msk [vmem:[#allocation2 + $0x38] sm:$0xff] %vm185, %v184
  // Predicated region
  $region22: #{tpu_custom_call.1} parent=0 // pred_check
    %p194 = pneg %p18
  $region23: #{tpu_custom_call.1} parent=0 // pred_check_branch
    %196 = sbr.rel (%p194) target = $region25
  $region24: #{tpu_custom_call.1} parent=0 // pred_region
    %v197 = vld [vmem:[#allocation2] sm:$0xff]
    %v198 = vld [vmem:[#allocation2 + $0x8] sm:$0xff]
    %v199 = vld [vmem:[#allocation2 + $0x10] sm:$0xff]
    %v200 = vld [vmem:[#allocation2 + $0x18] sm:$0xff]
    %v201 = vld [vmem:[#allocation2 + $0x20] sm:$0xff]
    %v202 = vld [vmem:[#allocation2 + $0x28] sm:$0xff]
    %v203 = vld [vmem:[#allocation2 + $0x30] sm:$0xff]
    %v204 = vld [vmem:[#allocation2 + $0x38] sm:$0xff]
    %v205 = vpack.c.bf16 %v198, %v197
    %v206 = vpack.c.bf16 %v200, %v199
    %v207 = vpack.c.bf16 %v202, %v201
    %v208 = vpack.c.bf16 %v204, %v203
    %v209 = vld [vmem:[%s2] sm:$0xf]
    %v210 = vld [vmem:[%s2 + $0x4] sm:$0xf]
    %v211 = vld [vmem:[%s2 + $0x8] sm:$0xf]
    %v212 = vld [vmem:[%s2 + $0xc] sm:$0xf]
    %v213 = vld [vmem:[%s3] sm:$0x1]
    %v215 = vlaneseq
    %v216 = vshrl.u32 %v215, 7
    %v217 = vsub.s32 0, %v216
    %v218 = vrot.slane %v213, %v217
    %v224 = vunpack.c.l.b16 %v209
    %v225 = vunpack.c.l.b16 %v210
    %v226 = vunpack.c.l.b16 %v211
    %v227 = vunpack.c.l.b16 %v212
    %v228 = vpack.c.b16 %v225, %v224
    %v229 = vpack.c.b16 %v227, %v226
    %v233 = vsel %vm185, %v205, 0
    %v236 = vsel %vm185, %v206, 0
    %v239 = vsel %vm185, %v207, 0
    %v242 = vsel %vm185, %v208, 0
    %244 = vmatprep.subr.bf16.mxu0 0
    %245 = vmatpush1.bf16.msra.mxu0 %v228
    %246 = vmatprep.subr.bf16.mxu0 0
    %247 = vmatpush1.bf16.msra.mxu0 %v229
    %248 = vmatprep.subr.bf16.mxu0 0
    %249 = vmatpush1.bf16.msra.mxu0 0
    %250 = vmatprep.subr.bf16.mxu0 0
    %251 = vmatpush1.bf16.msra.mxu0 0
    %252 = vmatprep.subr.bf16.mxu0 0
    %253 = vmatpush1.bf16.msra.mxu0 0
    %254 = vmatprep.subr.bf16.mxu0 0
    %255 = vmatpush1.bf16.msra.mxu0 0
    %256 = vmatprep.subr.bf16.mxu0 0
    %257 = vmatpush1.bf16.msra.mxu0 0
    %258 = vmatprep.subr.bf16.mxu0 0
    %259 = vmatpush1.bf16.msra.mxu0 0
    %260 = vmatprep.subr.bf16.mxu0 0
    %261 = vmatpush1.bf16.msra.mxu0 0
    %262 = vmatprep.subr.bf16.mxu0 0
    %263 = vmatpush1.bf16.msra.mxu0 0
    %264 = vmatprep.subr.bf16.mxu0 0
    %265 = vmatpush1.bf16.msra.mxu0 0
    %266 = vmatprep.subr.bf16.mxu0 0
    %267 = vmatpush1.bf16.msra.mxu0 0
    %268 = vmatprep.subr.bf16.mxu0 0
    %269 = vmatpush1.bf16.msra.mxu0 0
    %270 = vmatprep.subr.bf16.mxu0 0
    %271 = vmatpush1.bf16.msra.mxu0 0
    %272 = vmatprep.subr.bf16.mxu0 0
    %273 = vmatpush1.bf16.msra.mxu0 0
    %274 = vmatprep.subr.bf16.mxu0 0
    %275 = vmatpush1.bf16.msra.mxu0 0
    %276 = vmatprep.mubr.bf16.mxu0 0
    %277 = vmatmul.mubr.bf16.gmra.mrb[0].mxu0 %v233
    %v278 = vpop.f32.mrb[0].mxu0
    %v279 = vadd.f32 %v218, %v278
    %v280 = vpop.f32.mrb[0].mxu0
    %v281 = vpop.f32.mrb[0].mxu0
    %v282 = vadd.f32 %v218, %v281
    %v283 = vpop.f32.mrb[0].mxu0
    %284 = vmatprep.mubr.bf16.mxu0 0
    %285 = vmatmul.mubr.bf16.gmra.mrb[0].mxu0 %v236
    %v286 = vpop.f32.mrb[0].mxu0
    %v287 = vadd.f32 %v218, %v286
    %v288 = vpop.f32.mrb[0].mxu0
    %v289 = vpop.f32.mrb[0].mxu0
    %v290 = vadd.f32 %v218, %v289
    %v291 = vpop.f32.mrb[0].mxu0
    %292 = vmatprep.mubr.bf16.mxu0 0
    %293 = vmatmul.mubr.bf16.gmra.mrb[0].mxu0 %v239
    %v294 = vpop.f32.mrb[0].mxu0
    %v295 = vadd.f32 %v218, %v294
    %v296 = vpop.f32.mrb[0].mxu0
    %v297 = vpop.f32.mrb[0].mxu0
    %v298 = vadd.f32 %v218, %v297
    %v299 = vpop.f32.mrb[0].mxu0
    %300 = vmatprep.mubr.bf16.mxu0 0
    %301 = vmatmul.mubr.bf16.gmra.mrb[0].mxu0 %v242
    %v302 = vpop.f32.mrb[0].mxu0
    %v303 = vadd.f32 %v218, %v302
    %v304 = vpop.f32.mrb[0].mxu0
    %v305 = vpop.f32.mrb[0].mxu0
    %v306 = vadd.f32 %v218, %v305
    %v307 = vpop.f32.mrb[0].mxu0
    %308 = vdwg.mxu0
    %v309 = vmax.f32 %v279, 0.0
    %v310 = vmax.f32 %v282, 0.0
    %v311 = vmax.f32 %v287, 0.0
    %v312 = vmax.f32 %v290, 0.0
    %v313 = vmax.f32 %v295, 0.0
    %v314 = vmax.f32 %v298, 0.0
    %v315 = vmax.f32 %v303, 0.0
    %v316 = vmax.f32 %v306, 0.0
    %317 = vst.msk [vmem:[%s4] sm:$0xff] %vm185, %v309
    %318 = vst.msk [vmem:[%s4 + $0x8] sm:$0xff] %vm185, %v310
    %319 = vst.msk [vmem:[%s4 + $0x10] sm:$0xff] %vm185, %v311
    %320 = vst.msk [vmem:[%s4 + $0x18] sm:$0xff] %vm185, %v312
    %321 = vst.msk [vmem:[%s4 + $0x20] sm:$0xff] %vm185, %v313
    %322 = vst.msk [vmem:[%s4 + $0x28] sm:$0xff] %vm185, %v314
    %323 = vst.msk [vmem:[%s4 + $0x30] sm:$0xff] %vm185, %v315
    %324 = vst.msk [vmem:[%s4 + $0x38] sm:$0xff] %vm185, %v316
  $region25: #{tpu_custom_call.1} parent=0 // pred_fallthru
    _
  // Predicated region
  $region26: #{tpu_custom_call.1} parent=0 // pred_check
    _
  $region27: #{tpu_custom_call.1} parent=0 // pred_check_branch
    %326 = sbr.rel (0) target = $region29
  $region28: #{tpu_custom_call.1} parent=0 // pred_region
    _
  $region29: #{tpu_custom_call.1} parent=0 // pred_fallthru
    _
  // Predicated region
  $region30: #{tpu_custom_call.1} parent=0 // pred_check
    _
  $region31: #{tpu_custom_call.1} parent=0 // pred_check_branch
    %328 = sbr.rel (0) target = $region33
  $region32: #{tpu_custom_call.1} parent=0 // pred_region
    _
  $region33: #{tpu_custom_call.1} parent=0 // pred_fallthru
    _

</llo_original>
